<compile_context>
chip_gen: v7x
topology: tpu7x:2x2x1
jax: 0.10.0
libtpu: 0.0.40
codegen_flags: <defaults>
</compile_context>

<pallas_src>
import jax
import jax.numpy as jnp
from jax.experimental import pallas as pl
from jax.experimental.pallas import tpu as pltpu

KSIZE = 7
PAD = KSIZE // 2
LANES = 128


def _make_band_matrices(conv_w, W, C):
    """Band matrices M (KSIZE, 2W, W), bf16, with 1/C folded into the sum half.

    For f = [channel_sum | channel_max] of shape (H, 2W):
        z_kh = f @ M[kh]   gives the kw-direction of the 7x7 'same' conv
    (the zero band edges realize the W padding for free).
    """
    f32 = jnp.float32
    wi = jnp.arange(W)[:, None]          # input column  w'
    wj = jnp.arange(W)[None, :]          # output column w
    off = wi - wj + PAD                  # kw = w' - w + PAD
    valid = (off >= 0) & (off < KSIZE)
    wk = conv_w[0].astype(f32)           # (2, 7, 7)
    band = jnp.where(valid[None, None],
                     wk[:, :, jnp.clip(off, 0, KSIZE - 1)], 0.0)   # (2, 7, W, W)
    # Fold the 1/C of the channel mean into the avg-channel taps (the kernel
    # feeds raw channel sums) and stack both channels along the contraction dim.
    band = band * jnp.array([1.0 / C, 1.0], f32).reshape(2, 1, 1, 1)
    m = jnp.concatenate([band[0], band[1]], axis=1)                # (7, 2W, W)
    return m.astype(jnp.bfloat16)


def _pick_tiling(C, H, W):
    """Channel-tile size + scoped-VMEM limit from a per-generation byte budget."""
    try:
        vmem_cap = int(pltpu.get_tpu_info().vmem_capacity_bytes)
    except Exception:
        vmem_cap = 64 * 1024 * 1024            # conservative fallback (v7x per-TC)
    vmem_limit = int(min((vmem_cap * 3) // 4, 100 * 1024 * 1024))

    per_ch = H * W * 4                         # one f32 channel slab
    m_bytes = KSIZE * (2 * W) * W * 2          # bf16 band matrices
    # Double-buffered band matrices + outputs, scratch slab, finalize temporaries.
    fixed = 2 * m_bytes + 4 * per_ch + 2 * per_ch + (2 << 20)
    avail = max(vmem_limit - fixed, per_ch)
    # Double-buffered x block; ~4 MiB per block is enough to amortize the
    # ~0.35 us per-grid-step overhead without starving the rest of VMEM.
    block_budget = min(avail // 2, 4 * 1024 * 1024)
    tile_c = int(max(1, min(C, block_budget // per_ch)))
    return tile_c, vmem_limit


def spatial_attention(x, conv_w, gamma=1.0, beta=0.0, eps=1e-5, tile_c=None):
    """x: (N, C, H, W) float32; conv_w: (1, 2, 7, 7) float32 -> (N, 1, H, W)."""
    N, C, H, W = x.shape

    auto_tile_c, vmem_limit = _pick_tiling(C, H, W)
    if tile_c is None:
        tile_c = auto_tile_c
    tile_c = int(max(1, min(tile_c, C)))
    num_c = -(-C // tile_c)                    # cdiv: works for any C
    has_tail = (C % tile_c) != 0

    m_mats = _make_band_matrices(conv_w, W, C)  # (7, 2W, W) bf16, 1/C folded in

    # ------------- Pass 1: fused channel sum/max + 7x7 conv + BN partials -----
    def conv_kernel(x_ref, m_ref, y_ref, ysum_ref, ysq_ref, f_sc):
        ci = pl.program_id(1)

        @pl.when(ci == 0)
        def _init():
            f_sc[:, :W] = jnp.zeros((H, W), jnp.float32)            # running sum
            f_sc[:, W:] = jnp.full((H, W), -jnp.inf, jnp.float32)   # running max

        # Vectorized fused reduction: one block load, tree-reducible sum/max
        # (no serial per-channel dependency chain).
        xt = x_ref[...].astype(jnp.float32)                  # (tile_c, H, W)
        if has_tail:
            ch = ci * tile_c + jax.lax.broadcasted_iota(
                jnp.int32, (tile_c, H, W), 0)
            valid = ch < C
            xs = jnp.where(valid, xt, 0.0)
            xm = jnp.where(valid, xt, -jnp.inf)
        else:
            xs, xm = xt, xt
        f_sc[:, :W] = f_sc[:, :W] + xs.sum(axis=0)
        f_sc[:, W:] = jnp.maximum(f_sc[:, W:], xm.max(axis=0))

        @pl.when(ci == num_c - 1)
        def _finalize():
            f = f_sc[...].astype(jnp.bfloat16)                # (H, 2W): [sum|max]
            row = jax.lax.broadcasted_iota(jnp.int32, (H, W), 0)
            acc = jnp.zeros((H, W), jnp.float32)
            for kh in range(KSIZE):                           # 7 MXU matmuls/image
                d = kh - PAD
                z = jnp.dot(f, m_ref[kh], preferred_element_type=jnp.float32)
                if d == 0:
                    acc = acc + z
                else:
                    zs = pltpu.roll(z, shift=(-d) % H, axis=0)   # XLU, ~free
                    keep = (row + d >= 0) & (row + d < H)        # H zero padding
                    acc = acc + jnp.where(keep, zs, 0.0)
            # TODO(synk): for small W a lane-dense flattened (1, H*W) y slab would
            # avoid the 16/128-lane masked stores here (tiny traffic at this size).
            y_ref[...] = acc
            # Per-image BN partials -> no extra full HBM read of y between passes.
            ysum_ref[...] = jnp.sum(jnp.sum(acc, axis=1, keepdims=True),
                                    axis=0, keepdims=True)
            ysq_ref[...] = jnp.sum(jnp.sum(acc * acc, axis=1, keepdims=True),
                                   axis=0, keepdims=True)

    # TODO(synk): for very large H*W (or N=1 on v7x megacore) add an H-tile
    # "parallel" grid axis with a 3-row halo; not needed at these sizes.
    y, ysum, ysq = pl.pallas_call(
        conv_kernel,
        out_shape=(jax.ShapeDtypeStruct((N, H, W), jnp.float32),
                   jax.ShapeDtypeStruct((N, 1, 1), jnp.float32),
                   jax.ShapeDtypeStruct((N, 1, 1), jnp.float32)),
        grid=(N, num_c),
        in_specs=[
            pl.BlockSpec((None, tile_c, H, W), lambda n, c: (n, c, 0, 0)),
            # TODO(synk): for very large W, single-buffer this constant-index
            # input (pipeline_mode) or switch the W direction to roll+FMA so it
            # stays out of the VMEM budget.
            pl.BlockSpec((KSIZE, 2 * W, W), lambda n, c: (0, 0, 0)),
        ],
        out_specs=[
            pl.BlockSpec((None, H, W), lambda n, c: (n, 0, 0)),
            pl.BlockSpec((None, 1, 1), lambda n, c: (n, 0, 0)),
            pl.BlockSpec((None, 1, 1), lambda n, c: (n, 0, 0)),
        ],
        scratch_shapes=[pltpu.VMEM((H, 2 * W), jnp.float32)],   # [sum | max] slab
        compiler_params=pltpu.CompilerParams(
            dimension_semantics=("parallel", "arbitrary"),
            vmem_limit_bytes=vmem_limit),
    )(x, m_mats)

    # BatchNorm2d(1) train-mode statistics are global over (N, H, W): combine the
    # per-image partial sums (2N scalars) and fold into an affine (a, b).
    total = float(N * H * W)
    mean = jnp.sum(ysum) / total
    var = jnp.maximum(jnp.sum(ysq) / total - mean * mean, 0.0)   # biased var
    a = gamma * jax.lax.rsqrt(var + eps)
    b = beta - mean * a
    ab = jnp.stack([a, b]).astype(jnp.float32)                   # (2,) -> SMEM

    # ------------- Pass 2: BN affine + sigmoid on lane-dense blocks -----------
    L = N * H * W
    rows = -(-L // LANES)
    Lpad = rows * LANES
    y_flat = y.reshape(-1)
    if Lpad != L:
        y_flat = jnp.pad(y_flat, (0, Lpad - L))
    y2 = y_flat.reshape(rows, LANES)

    block_rows = min(rows, 4096)            # <= 2 MiB per block
    grid2 = (-(-rows // block_rows),)

    def bn_sigmoid_kernel(ab_ref, y_ref, o_ref):
        o_ref[...] = jax.nn.sigmoid(y_ref[...] * ab_ref[0] + ab_ref[1])

    out2 = pl.pallas_call(
        bn_sigmoid_kernel,
        out_shape=jax.ShapeDtypeStruct((rows, LANES), jnp.float32),
        grid=grid2,
        in_specs=[
            pl.BlockSpec(memory_space=pltpu.MemorySpace.SMEM),   # (a, b) scalars
            pl.BlockSpec((block_rows, LANES), lambda i: (i, 0)),
        ],
        out_specs=pl.BlockSpec((block_rows, LANES), lambda i: (i, 0)),
        compiler_params=pltpu.CompilerParams(
            dimension_semantics=("parallel",)),
    )(ab, y2)

    out = out2.reshape(-1)[:L].reshape(N, H, W)
    return out[:, None, :, :]                     # (N, 1, H, W), matches PyTorch


# ---------------------------- pure-JAX reference -----------------------------
def spatial_attention_reference(x, conv_w, gamma=1.0, beta=0.0, eps=1e-5):
    N, C, H, W = x.shape
    avg = jnp.mean(x, axis=1)
    mx = jnp.max(x, axis=1)
    f = jnp.stack([avg, mx], axis=1)                             # (N, 2, H, W)
    fp = jnp.pad(f, ((0, 0), (0, 0), (PAD, PAD), (PAD, PAD)))
    y = jnp.zeros((N, H, W), jnp.float32)
    for c in range(2):
        for kh in range(KSIZE):
            for kw in range(KSIZE):
                y = y + conv_w[0, c, kh, kw] * fp[:, c, kh:kh + H, kw:kw + W]
    mean = jnp.mean(y)
    var = jnp.mean((y - mean) ** 2)
    yn = (y - mean) * jax.lax.rsqrt(var + eps) * gamma + beta
    return jax.nn.sigmoid(yn)[:, None]


if __name__ == "__main__":
    key = jax.random.PRNGKey(0)
    kx, kw = jax.random.split(key)

    N, C, H, W = 2, 4, 16, 16
    x = jax.random.normal(kx, (N, C, H, W), dtype=jnp.float32)
    # conv1: nn.Conv2d(2, 1, 7, padding=3, bias=False) -> weight (1, 2, 7, 7)
    conv_w = 0.05 * jax.random.normal(kw, (1, 2, KSIZE, KSIZE), dtype=jnp.float32)

    out = spatial_attention(x, conv_w)
    out = jax.block_until_ready(out)

    assert out.shape == (N, 1, H, W)
    assert bool(jnp.all(jnp.isfinite(out)))

    ref = spatial_attention_reference(x, conv_w)
    err = float(jnp.max(jnp.abs(out - ref)))
    # Tolerance accounts for bf16 MXU inputs in the 7x7 conv (expected post-BN,
    # post-sigmoid deviation is ~1e-3).
    assert err < 2e-2, f"mismatch vs reference: max abs err = {err}"
    print("KERNEL_OK")
</pallas_src>

<mosaic_0001>
module attributes {stable_mosaic.version = 11 : i64} {
  func.func @conv_kernel(%arg0: i32, %arg1: i32, %arg2: memref<1x4x16x16xf32, #tpu.memory_space<vmem>>, %arg3: memref<7x32x16xbf16, #tpu.memory_space<vmem>>, %arg4: memref<1x16x16xf32, #tpu.memory_space<vmem>>, %arg5: memref<1x1x1xf32, #tpu.memory_space<vmem>>, %arg6: memref<1x1x1xf32, #tpu.memory_space<vmem>>, %arg7: memref<16x32xf32, #tpu.memory_space<vmem>>) attributes {dimension_semantics = [#tpu.dimension_semantics<parallel>, #tpu.dimension_semantics<arbitrary>], iteration_bounds = array<i64: 2, 1>, scalar_prefetch = 0 : i64, scratch_operands = 1 : i64, tpu.core_type = #tpu.core_type<tc>, window_params = [{transform_indices = @transform_0, window_bounds = array<i64: 1, 4, 16, 16>}, {pipeline_mode = #tpu.pipeline_mode<synchronous>, transform_indices = @transform_1, window_bounds = array<i64: 7, 32, 16>}, {transform_indices = @transform_2, window_bounds = array<i64: 1, 16, 16>}, {transform_indices = @transform_3, window_bounds = array<i64: 1, 1, 1>}, {transform_indices = @transform_4, window_bounds = array<i64: 1, 1, 1>}]} {
    %c0_i32 = arith.constant 0 : i32
    %0 = arith.cmpi eq, %arg1, %c0_i32 : i32
    %1 = arith.extui %0 : i1 to i32
    %c0_i32_0 = arith.constant 0 : i32
    %2 = arith.cmpi ne, %1, %c0_i32_0 : i32
    scf.if %2 {
      %cst_14 = arith.constant 0.000000e+00 : f32
      %16 = vector.broadcast %cst_14 : f32 to vector<16x16xf32>
      %c0_15 = arith.constant 0 : index
      %c0_16 = arith.constant 0 : index
      %17 = vector.load %arg7[%c0_15, %c0_16] : memref<16x32xf32, #tpu.memory_space<vmem>>, vector<16x16xf32>
      tpu.vector_store %arg7[%c0_15, %c0_16], %16 {strides = array<i32>} : memref<16x32xf32, #tpu.memory_space<vmem>>, vector<16x16xf32>,
      %cst_17 = arith.constant 0xFF800000 : f32
      %18 = vector.broadcast %cst_17 : f32 to vector<16x16xf32>
      %c0_18 = arith.constant 0 : index
      %c16_19 = arith.constant 16 : index
      %19 = vector.load %arg7[%c0_18, %c16_19] : memref<16x32xf32, #tpu.memory_space<vmem>>, vector<16x16xf32>
      tpu.vector_store %arg7[%c0_18, %c16_19], %18 {strides = array<i32>} : memref<16x32xf32, #tpu.memory_space<vmem>>, vector<16x16xf32>,
    } else {
    }
    %c0 = arith.constant 0 : index
    %c0_1 = arith.constant 0 : index
    %c0_2 = arith.constant 0 : index
    %c0_3 = arith.constant 0 : index
    %3 = vector.load %arg2[%c0, %c0_1, %c0_2, %c0_3] : memref<1x4x16x16xf32, #tpu.memory_space<vmem>>, vector<1x4x16x16xf32>
    %4 = vector.shape_cast %3 : vector<1x4x16x16xf32> to vector<4x16x16xf32>
    %c0_4 = arith.constant 0 : index
    %c0_5 = arith.constant 0 : index
    %5 = vector.load %arg7[%c0_4, %c0_5] : memref<16x32xf32, #tpu.memory_space<vmem>>, vector<16x16xf32>
    %cst = arith.constant dense<0.000000e+00> : vector<16x16xf32>
    %6 = vector.multi_reduction <add>, %4, %cst [0] : vector<4x16x16xf32> to vector<16x16xf32>
    %7 = arith.addf %5, %6 : vector<16x16xf32>
    %c0_6 = arith.constant 0 : index
    %c0_7 = arith.constant 0 : index
    %8 = vector.load %arg7[%c0_6, %c0_7] : memref<16x32xf32, #tpu.memory_space<vmem>>, vector<16x16xf32>
    tpu.vector_store %arg7[%c0_6, %c0_7], %7 {strides = array<i32>} : memref<16x32xf32, #tpu.memory_space<vmem>>, vector<16x16xf32>,
    %c0_8 = arith.constant 0 : index
    %c16 = arith.constant 16 : index
    %9 = vector.load %arg7[%c0_8, %c16] : memref<16x32xf32, #tpu.memory_space<vmem>>, vector<16x16xf32>
    %cst_9 = arith.constant dense<0xFF800000> : vector<16x16xf32>
    %10 = vector.multi_reduction <maximumf>, %4, %cst_9 [0] : vector<4x16x16xf32> to vector<16x16xf32>
    %11 = arith.maximumf %9, %10 : vector<16x16xf32>
    %c0_10 = arith.constant 0 : index
    %c16_11 = arith.constant 16 : index
    %12 = vector.load %arg7[%c0_10, %c16_11] : memref<16x32xf32, #tpu.memory_space<vmem>>, vector<16x16xf32>
    tpu.vector_store %arg7[%c0_10, %c16_11], %11 {strides = array<i32>} : memref<16x32xf32, #tpu.memory_space<vmem>>, vector<16x16xf32>,
    %c0_i32_12 = arith.constant 0 : i32
    %13 = arith.cmpi eq, %arg1, %c0_i32_12 : i32
    %14 = arith.extui %13 : i1 to i32
    %c0_i32_13 = arith.constant 0 : i32
    %15 = arith.cmpi ne, %14, %c0_i32_13 : i32
    scf.if %15 {
      %c0_14 = arith.constant 0 : index
      %c0_15 = arith.constant 0 : index
      %16 = vector.load %arg7[%c0_14, %c0_15] : memref<16x32xf32, #tpu.memory_space<vmem>>, vector<16x32xf32>
      %17 = arith.truncf %16 : vector<16x32xf32> to vector<16x32xbf16>
      %18 = tpu.iota {dimensions = array<i32: 0>} : vector<16x16xi32>
      %cst_16 = arith.constant 0.000000e+00 : f32
      %19 = vector.broadcast %cst_16 : f32 to vector<16x16xf32>
      %c0_17 = arith.constant 0 : index
      %c0_18 = arith.constant 0 : index
      %c0_19 = arith.constant 0 : index
      %20 = vector.load %arg3[%c0_17, %c0_18, %c0_19] : memref<7x32x16xbf16, #tpu.memory_space<vmem>>, vector<1x32x16xbf16>
      %21 = vector.shape_cast %20 : vector<1x32x16xbf16> to vector<32x16xbf16>
      %cst_20 = arith.constant dense<0.000000e+00> : vector<16x16xf32>
      %22 = tpu.matmul %17, %21, %cst_20 {dimension_numbers = #tpu.dot_dimension_numbers<[1], [0], [0], [1], [0, 0, 1, 1], [], []>} : vector<16x32xbf16>, vector<32x16xbf16>, vector<16x16xf32> -> vector<16x16xf32>
      %c3_i32 = arith.constant 3 : i32
      %23 = tpu.dynamic_rotate %22 by %c3_i32 dim 0 : vector<16x16xf32>, i32 -> vector<16x16xf32>
      %c-3_i32 = arith.constant -3 : i32
      %24 = vector.broadcast %c-3_i32 : i32 to vector<16x16xi32>
      %25 = arith.addi %18, %24 : vector<16x16xi32>
      %c0_i32_21 = arith.constant 0 : i32
      %26 = vector.broadcast %c0_i32_21 : i32 to vector<16x16xi32>
      %27 = arith.cmpi sge, %25, %26 : vector<16x16xi32>
      %c-3_i32_22 = arith.constant -3 : i32
      %28 = vector.broadcast %c-3_i32_22 : i32 to vector<16x16xi32>
      %29 = arith.addi %18, %28 : vector<16x16xi32>
      %c16_i32 = arith.constant 16 : i32
      %30 = vector.broadcast %c16_i32 : i32 to vector<16x16xi32>
      %31 = arith.cmpi slt, %29, %30 : vector<16x16xi32>
      %32 = arith.andi %27, %31 : vector<16x16xi1>
      %cst_23 = arith.constant 0.000000e+00 : f32
      %33 = vector.broadcast %cst_23 : f32 to vector<16x16xf32>
      %34 = arith.select %32, %23, %33 : vector<16x16xi1>, vector<16x16xf32>
      %35 = arith.addf %19, %34 : vector<16x16xf32>
      %c1 = arith.constant 1 : index
      %c0_24 = arith.constant 0 : index
      %c0_25 = arith.constant 0 : index
      %36 = vector.load %arg3[%c1, %c0_24, %c0_25] : memref<7x32x16xbf16, #tpu.memory_space<vmem>>, vector<1x32x16xbf16>
      %37 = vector.shape_cast %36 : vector<1x32x16xbf16> to vector<32x16xbf16>
      %cst_26 = arith.constant dense<0.000000e+00> : vector<16x16xf32>
      %38 = tpu.matmul %17, %37, %cst_26 {dimension_numbers = #tpu.dot_dimension_numbers<[1], [0], [0], [1], [0, 0, 1, 1], [], []>} : vector<16x32xbf16>, vector<32x16xbf16>, vector<16x16xf32> -> vector<16x16xf32>
      %c2_i32 = arith.constant 2 : i32
      %39 = tpu.dynamic_rotate %38 by %c2_i32 dim 0 : vector<16x16xf32>, i32 -> vector<16x16xf32>
      %c-2_i32 = arith.constant -2 : i32
      %40 = vector.broadcast %c-2_i32 : i32 to vector<16x16xi32>
      %41 = arith.addi %18, %40 : vector<16x16xi32>
      %c0_i32_27 = arith.constant 0 : i32
      %42 = vector.broadcast %c0_i32_27 : i32 to vector<16x16xi32>
      %43 = arith.cmpi sge, %41, %42 : vector<16x16xi32>
      %c-2_i32_28 = arith.constant -2 : i32
      %44 = vector.broadcast %c-2_i32_28 : i32 to vector<16x16xi32>
      %45 = arith.addi %18, %44 : vector<16x16xi32>
      %c16_i32_29 = arith.constant 16 : i32
      %46 = vector.broadcast %c16_i32_29 : i32 to vector<16x16xi32>
      %47 = arith.cmpi slt, %45, %46 : vector<16x16xi32>
      %48 = arith.andi %43, %47 : vector<16x16xi1>
      %cst_30 = arith.constant 0.000000e+00 : f32
      %49 = vector.broadcast %cst_30 : f32 to vector<16x16xf32>
      %50 = arith.select %48, %39, %49 : vector<16x16xi1>, vector<16x16xf32>
      %51 = arith.addf %35, %50 : vector<16x16xf32>
      %c2 = arith.constant 2 : index
      %c0_31 = arith.constant 0 : index
      %c0_32 = arith.constant 0 : index
      %52 = vector.load %arg3[%c2, %c0_31, %c0_32] : memref<7x32x16xbf16, #tpu.memory_space<vmem>>, vector<1x32x16xbf16>
      %53 = vector.shape_cast %52 : vector<1x32x16xbf16> to vector<32x16xbf16>
      %cst_33 = arith.constant dense<0.000000e+00> : vector<16x16xf32>
      %54 = tpu.matmul %17, %53, %cst_33 {dimension_numbers = #tpu.dot_dimension_numbers<[1], [0], [0], [1], [0, 0, 1, 1], [], []>} : vector<16x32xbf16>, vector<32x16xbf16>, vector<16x16xf32> -> vector<16x16xf32>
      %c1_i32 = arith.constant 1 : i32
      %55 = tpu.dynamic_rotate %54 by %c1_i32 dim 0 : vector<16x16xf32>, i32 -> vector<16x16xf32>
      %c-1_i32 = arith.constant -1 : i32
      %56 = vector.broadcast %c-1_i32 : i32 to vector<16x16xi32>
      %57 = arith.addi %18, %56 : vector<16x16xi32>
      %c0_i32_34 = arith.constant 0 : i32
      %58 = vector.broadcast %c0_i32_34 : i32 to vector<16x16xi32>
      %59 = arith.cmpi sge, %57, %58 : vector<16x16xi32>
      %c-1_i32_35 = arith.constant -1 : i32
      %60 = vector.broadcast %c-1_i32_35 : i32 to vector<16x16xi32>
      %61 = arith.addi %18, %60 : vector<16x16xi32>
      %c16_i32_36 = arith.constant 16 : i32
      %62 = vector.broadcast %c16_i32_36 : i32 to vector<16x16xi32>
      %63 = arith.cmpi slt, %61, %62 : vector<16x16xi32>
      %64 = arith.andi %59, %63 : vector<16x16xi1>
      %cst_37 = arith.constant 0.000000e+00 : f32
      %65 = vector.broadcast %cst_37 : f32 to vector<16x16xf32>
      %66 = arith.select %64, %55, %65 : vector<16x16xi1>, vector<16x16xf32>
      %67 = arith.addf %51, %66 : vector<16x16xf32>
      %c3 = arith.constant 3 : index
      %c0_38 = arith.constant 0 : index
      %c0_39 = arith.constant 0 : index
      %68 = vector.load %arg3[%c3, %c0_38, %c0_39] : memref<7x32x16xbf16, #tpu.memory_space<vmem>>, vector<1x32x16xbf16>
      %69 = vector.shape_cast %68 : vector<1x32x16xbf16> to vector<32x16xbf16>
      %cst_40 = arith.constant dense<0.000000e+00> : vector<16x16xf32>
      %70 = tpu.matmul %17, %69, %cst_40 {dimension_numbers = #tpu.dot_dimension_numbers<[1], [0], [0], [1], [0, 0, 1, 1], [], []>} : vector<16x32xbf16>, vector<32x16xbf16>, vector<16x16xf32> -> vector<16x16xf32>
      %71 = arith.addf %67, %70 : vector<16x16xf32>
      %c4 = arith.constant 4 : index
      %c0_41 = arith.constant 0 : index
      %c0_42 = arith.constant 0 : index
      %72 = vector.load %arg3[%c4, %c0_41, %c0_42] : memref<7x32x16xbf16, #tpu.memory_space<vmem>>, vector<1x32x16xbf16>
      %73 = vector.shape_cast %72 : vector<1x32x16xbf16> to vector<32x16xbf16>
      %cst_43 = arith.constant dense<0.000000e+00> : vector<16x16xf32>
      %74 = tpu.matmul %17, %73, %cst_43 {dimension_numbers = #tpu.dot_dimension_numbers<[1], [0], [0], [1], [0, 0, 1, 1], [], []>} : vector<16x32xbf16>, vector<32x16xbf16>, vector<16x16xf32> -> vector<16x16xf32>
      %c15_i32 = arith.constant 15 : i32
      %75 = tpu.dynamic_rotate %74 by %c15_i32 dim 0 : vector<16x16xf32>, i32 -> vector<16x16xf32>
      %c1_i32_44 = arith.constant 1 : i32
      %76 = vector.broadcast %c1_i32_44 : i32 to vector<16x16xi32>
      %77 = arith.addi %18, %76 : vector<16x16xi32>
      %c0_i32_45 = arith.constant 0 : i32
      %78 = vector.broadcast %c0_i32_45 : i32 to vector<16x16xi32>
      %79 = arith.cmpi sge, %77, %78 : vector<16x16xi32>
      %c1_i32_46 = arith.constant 1 : i32
      %80 = vector.broadcast %c1_i32_46 : i32 to vector<16x16xi32>
      %81 = arith.addi %18, %80 : vector<16x16xi32>
      %c16_i32_47 = arith.constant 16 : i32
      %82 = vector.broadcast %c16_i32_47 : i32 to vector<16x16xi32>
      %83 = arith.cmpi slt, %81, %82 : vector<16x16xi32>
      %84 = arith.andi %79, %83 : vector<16x16xi1>
      %cst_48 = arith.constant 0.000000e+00 : f32
      %85 = vector.broadcast %cst_48 : f32 to vector<16x16xf32>
      %86 = arith.select %84, %75, %85 : vector<16x16xi1>, vector<16x16xf32>
      %87 = arith.addf %71, %86 : vector<16x16xf32>
      %c5 = arith.constant 5 : index
      %c0_49 = arith.constant 0 : index
      %c0_50 = arith.constant 0 : index
      %88 = vector.load %arg3[%c5, %c0_49, %c0_50] : memref<7x32x16xbf16, #tpu.memory_space<vmem>>, vector<1x32x16xbf16>
      %89 = vector.shape_cast %88 : vector<1x32x16xbf16> to vector<32x16xbf16>
      %cst_51 = arith.constant dense<0.000000e+00> : vector<16x16xf32>
      %90 = tpu.matmul %17, %89, %cst_51 {dimension_numbers = #tpu.dot_dimension_numbers<[1], [0], [0], [1], [0, 0, 1, 1], [], []>} : vector<16x32xbf16>, vector<32x16xbf16>, vector<16x16xf32> -> vector<16x16xf32>
      %c14_i32 = arith.constant 14 : i32
      %91 = tpu.dynamic_rotate %90 by %c14_i32 dim 0 : vector<16x16xf32>, i32 -> vector<16x16xf32>
      %c2_i32_52 = arith.constant 2 : i32
      %92 = vector.broadcast %c2_i32_52 : i32 to vector<16x16xi32>
      %93 = arith.addi %18, %92 : vector<16x16xi32>
      %c0_i32_53 = arith.constant 0 : i32
      %94 = vector.broadcast %c0_i32_53 : i32 to vector<16x16xi32>
      %95 = arith.cmpi sge, %93, %94 : vector<16x16xi32>
      %c2_i32_54 = arith.constant 2 : i32
      %96 = vector.broadcast %c2_i32_54 : i32 to vector<16x16xi32>
      %97 = arith.addi %18, %96 : vector<16x16xi32>
      %c16_i32_55 = arith.constant 16 : i32
      %98 = vector.broadcast %c16_i32_55 : i32 to vector<16x16xi32>
      %99 = arith.cmpi slt, %97, %98 : vector<16x16xi32>
      %100 = arith.andi %95, %99 : vector<16x16xi1>
      %cst_56 = arith.constant 0.000000e+00 : f32
      %101 = vector.broadcast %cst_56 : f32 to vector<16x16xf32>
      %102 = arith.select %100, %91, %101 : vector<16x16xi1>, vector<16x16xf32>
      %103 = arith.addf %87, %102 : vector<16x16xf32>
      %c6 = arith.constant 6 : index
      %c0_57 = arith.constant 0 : index
      %c0_58 = arith.constant 0 : index
      %104 = vector.load %arg3[%c6, %c0_57, %c0_58] : memref<7x32x16xbf16, #tpu.memory_space<vmem>>, vector<1x32x16xbf16>
      %105 = vector.shape_cast %104 : vector<1x32x16xbf16> to vector<32x16xbf16>
      %cst_59 = arith.constant dense<0.000000e+00> : vector<16x16xf32>
      %106 = tpu.matmul %17, %105, %cst_59 {dimension_numbers = #tpu.dot_dimension_numbers<[1], [0], [0], [1], [0, 0, 1, 1], [], []>} : vector<16x32xbf16>, vector<32x16xbf16>, vector<16x16xf32> -> vector<16x16xf32>
      %c13_i32 = arith.constant 13 : i32
      %107 = tpu.dynamic_rotate %106 by %c13_i32 dim 0 : vector<16x16xf32>, i32 -> vector<16x16xf32>
      %c3_i32_60 = arith.constant 3 : i32
      %108 = vector.broadcast %c3_i32_60 : i32 to vector<16x16xi32>
      %109 = arith.addi %18, %108 : vector<16x16xi32>
      %c0_i32_61 = arith.constant 0 : i32
      %110 = vector.broadcast %c0_i32_61 : i32 to vector<16x16xi32>
      %111 = arith.cmpi sge, %109, %110 : vector<16x16xi32>
      %c3_i32_62 = arith.constant 3 : i32
      %112 = vector.broadcast %c3_i32_62 : i32 to vector<16x16xi32>
      %113 = arith.addi %18, %112 : vector<16x16xi32>
      %c16_i32_63 = arith.constant 16 : i32
      %114 = vector.broadcast %c16_i32_63 : i32 to vector<16x16xi32>
      %115 = arith.cmpi slt, %113, %114 : vector<16x16xi32>
      %116 = arith.andi %111, %115 : vector<16x16xi1>
      %cst_64 = arith.constant 0.000000e+00 : f32
      %117 = vector.broadcast %cst_64 : f32 to vector<16x16xf32>
      %118 = arith.select %116, %107, %117 : vector<16x16xi1>, vector<16x16xf32>
      %119 = arith.addf %103, %118 : vector<16x16xf32>
      %c0_65 = arith.constant 0 : index
      %c0_66 = arith.constant 0 : index
      %c0_67 = arith.constant 0 : index
      %120 = vector.load %arg4[%c0_65, %c0_66, %c0_67] : memref<1x16x16xf32, #tpu.memory_space<vmem>>, vector<1x16x16xf32>
      %121 = vector.shape_cast %120 : vector<1x16x16xf32> to vector<16x16xf32>
      %122 = vector.shape_cast %119 : vector<16x16xf32> to vector<1x16x16xf32>
      tpu.vector_store %arg4[%c0_65, %c0_66, %c0_67], %122 {strides = array<i32>} : memref<1x16x16xf32, #tpu.memory_space<vmem>>, vector<1x16x16xf32>,
      %cst_68 = arith.constant dense<0.000000e+00> : vector<16xf32>
      %123 = vector.multi_reduction <add>, %119, %cst_68 [1] : vector<16x16xf32> to vector<16xf32>
      %124 = vector.shape_cast %123 : vector<16xf32> to vector<16x1xf32>
      %cst_69 = arith.constant dense<0.000000e+00> : vector<1xf32>
      %125 = vector.multi_reduction <add>, %124, %cst_69 [0] : vector<16x1xf32> to vector<1xf32>
      %126 = vector.shape_cast %125 : vector<1xf32> to vector<1x1xf32>
      %c0_70 = arith.constant 0 : index
      %c0_71 = arith.constant 0 : index
      %c0_72 = arith.constant 0 : index
      %127 = vector.load %arg5[%c0_70, %c0_71, %c0_72] : memref<1x1x1xf32, #tpu.memory_space<vmem>>, vector<1x1x1xf32>
      %128 = vector.shape_cast %127 : vector<1x1x1xf32> to vector<1x1xf32>
      %129 = vector.shape_cast %126 : vector<1x1xf32> to vector<1x1x1xf32>
      tpu.vector_store %arg5[%c0_70, %c0_71, %c0_72], %129 {strides = array<i32>} : memref<1x1x1xf32, #tpu.memory_space<vmem>>, vector<1x1x1xf32>,
      %130 = arith.mulf %119, %119 : vector<16x16xf32>
      %cst_73 = arith.constant dense<0.000000e+00> : vector<16xf32>
      %131 = vector.multi_reduction <add>, %130, %cst_73 [1] : vector<16x16xf32> to vector<16xf32>
      %132 = vector.shape_cast %131 : vector<16xf32> to vector<16x1xf32>
      %cst_74 = arith.constant dense<0.000000e+00> : vector<1xf32>
      %133 = vector.multi_reduction <add>, %132, %cst_74 [0] : vector<16x1xf32> to vector<1xf32>
      %134 = vector.shape_cast %133 : vector<1xf32> to vector<1x1xf32>
      %c0_75 = arith.constant 0 : index
      %c0_76 = arith.constant 0 : index
      %c0_77 = arith.constant 0 : index
      %135 = vector.load %arg6[%c0_75, %c0_76, %c0_77] : memref<1x1x1xf32, #tpu.memory_space<vmem>>, vector<1x1x1xf32>
      %136 = vector.shape_cast %135 : vector<1x1x1xf32> to vector<1x1xf32>
      %137 = vector.shape_cast %134 : vector<1x1xf32> to vector<1x1x1xf32>
      tpu.vector_store %arg6[%c0_75, %c0_76, %c0_77], %137 {strides = array<i32>} : memref<1x1x1xf32, #tpu.memory_space<vmem>>, vector<1x1x1xf32>,
    } else {
    }
    return
  }
  func.func @transform_0(%arg0: i32, %arg1: i32) -> (i32, i32, i32, i32) {
    %c0_i32 = arith.constant 0 : i32
    %c0_i32_0 = arith.constant 0 : i32
    %c0_i32_1 = arith.constant 0 : i32
    return %arg0, %arg1, %c0_i32, %c0_i32_0 : i32, i32, i32, i32
  }
  func.func @transform_1(%arg0: i32, %arg1: i32) -> (i32, i32, i32) {
    %c0_i32 = arith.constant 0 : i32
    %c0_i32_0 = arith.constant 0 : i32
    %c0_i32_1 = arith.constant 0 : i32
    %c0_i32_2 = arith.constant 0 : i32
    return %c0_i32, %c0_i32_0, %c0_i32_1 : i32, i32, i32
  }
  func.func @transform_2(%arg0: i32, %arg1: i32) -> (i32, i32, i32) {
    %c0_i32 = arith.constant 0 : i32
    %c0_i32_0 = arith.constant 0 : i32
    %c0_i32_1 = arith.constant 0 : i32
    return %arg0, %c0_i32, %c0_i32_0 : i32, i32, i32
  }
  func.func @transform_3(%arg0: i32, %arg1: i32) -> (i32, i32, i32) {
    %c0_i32 = arith.constant 0 : i32
    %c0_i32_0 = arith.constant 0 : i32
    %c0_i32_1 = arith.constant 0 : i32
    return %arg0, %c0_i32, %c0_i32_0 : i32, i32, i32
  }
  func.func @transform_4(%arg0: i32, %arg1: i32) -> (i32, i32, i32) {
    %c0_i32 = arith.constant 0 : i32
    %c0_i32_0 = arith.constant 0 : i32
    %c0_i32_1 = arith.constant 0 : i32
    return %arg0, %c0_i32, %c0_i32_0 : i32, i32, i32
  }
}

</mosaic_0001>

<llo_original>
// kernel: tpu_custom_call.1
$region0: #{tpu_custom_call.1}
  #allocation0 [shape = 'u32[]', space=smem, size = 0x4, offset = 0x4, fixed_abs, tag = 'smem constant byte address 0x4 - core index']
  #allocation1 [shape = 'u32[144,128]{1,0:T(1,128)}', space=vmem, size = 0x12000, scoped, tag = 'internal scratch']
  #allocation2 [shape = 'f32[16,32]{1,0:T(8,128)}', space=vmem, size = 0x2000, scoped, tag = 'scratch operand']
  %s0 = inlined_call_operand.vmem [shape: f32[2,4,16,16], index: 0, kind: input, shape index: {}]
  %s1 = inlined_call_operand.vmem [shape: bf16[7,32,16], index: 1, kind: input, shape index: {}]
  %s2 = inlined_call_operand.hbm [shape: f32[2,16,16], index: 2, kind: output, shape index: {0}]
  %s3 = inlined_call_operand.vmem [shape: f32[2,1,1], index: 3, kind: output, shape index: {1}]
  %s4 = inlined_call_operand.vmem [shape: f32[2,1,1], index: 4, kind: output, shape index: {2}]
  %5 = xla_tuple %s2, %s3, %s4
  %s6 = sld [smem:[#allocation0]]
  $region65: #{tpu_custom_call.1} parent=0
    _
  %s8 = ssub.s32 1, %s6
  %s9 = scalar_select 0, %s8, %s6
  $region1: #{tpu_custom_call.1} parent=0
    #allocation3 [shape = 'u8[16384]{0}', space=vmem, size = 0x4000, scoped, tag = 'output window, operand 0']
    #allocation4 [shape = 's32[2]{0}', space=sflag, size = 0x8, scoped, tag = 'scoped memory for tpu_custom_call.1']
    %10 = vsyncpa [#allocation4], 0
    %s11 = scalar_lea.sflag [#allocation4], 1
    %12 = vsyncpa %s11, 0
    loop: start=0, step=1, limit=4
    $region2: #{tpu_custom_call.1} parent=1 // loop_pre_header
      _
    $region3: #{tpu_custom_call.1} parent=1 // loop_header
      %s14 = sphi 0, %s18
      %p15 = scmp.ge.s32.totalorder %s14, 4
      %s21 = sphi 0, %s33
      %s22 = sphi 0, %s29
      %s23 = sphi 0, %s21
      %s24 = sphi 0, %s22
      %s25 = sphi 0, %s23
      %s26 = sphi 0, %s24
      %s38 = sphi 0, %s40
      %s41 = sphi 0, %s38
      %s42 = sphi 0, %s41
      %s58 = sphi 0, %s42
      %s62 = sphi 0, %s62
      %s64 = sphi 0, %s62
      %s65 = sphi 0, %s64
      %s79 = sphi 0, %s65
      %s85 = sphi 0, %s87
      %s88 = sphi 0, %s85
      %s89 = sphi 0, %s88
      %s105 = sphi 0, %s89
      %s111 = sphi 0, %s113
      %s114 = sphi 0, %s111
      %s115 = sphi 0, %s114
      %s131 = sphi 0, %s115
      %s137 = sphi 0, %s139
      %s140 = sphi 0, %s137
      %s141 = sphi 0, %s140
      %s157 = sphi 0, %s141
    $region4: #{tpu_custom_call.1} parent=1 // loop_header_branch
      %17 = sbr.rel (%p15) target = $region8
    $region5: #{tpu_custom_call.1} parent=1 // loop_body
      %s19 = ssub.s32 %s14, 1
      %s20 = ssub.s32 %s14, 2
      %s27 = sadd.s32 1, %s22
      %p28 = scmp.ge.s32.totalorder %s27, 1
      %s29 = scalar_select %p28, 0, %s27
      %s30 = sadd.s32 1, %s21
      %s31 = scalar_select %p28, %s30, %s21
      %p32 = scmp.ge.s32.totalorder %s31, 2
      %s33 = scalar_select %p32, 0, %s31
      %s34 = ssub.s32 %s21, %s33
      %s35 = ssub.s32 %s22, %s29
      %s36 = sor.u32 %s34, %s35
      %p37 = scmp.eq.s32.totalorder %s36, 0
      %s39 = sadd.s32 %s38, 1
      %s40 = scalar_select %p37, %s38, %s39
      %p43 = pneg %p37
      %p44 = scmp.eq.s32.totalorder %s14, 1
      %p45 = por %p43, %p44
      %p46 = scmp.ne.s32.totalorder %s38, %s41
      %p47 = scmp.eq.s32.totalorder %s14, 0
      %p48 = por %p46, %p47
      %p49 = scmp.ne.s32.totalorder %s38, %s41
      %p50 = scmp.eq.s32.totalorder %s19, 1
      %p51 = por %p49, %p50
      %p52 = scmp.ne.s32.totalorder %s41, %s42
      %p53 = scmp.eq.s32.totalorder %s19, 0
      %p54 = por %p52, %p53
      %p55 = scmp.ne.s32.totalorder %s41, %s42
      %p56 = scmp.eq.s32.totalorder %s20, 1
      %p57 = por %p55, %p56
      %p59 = scmp.ne.s32.totalorder %s42, %s58
      %p60 = scmp.eq.s32.totalorder %s20, 0
      %p61 = por %p59, %p60
      %s63 = sadd.s32 %s62, 1
      %p66 = scmp.eq.s32.totalorder %s14, 1
      %p67 = scmp.ne.s32.totalorder %s62, %s64
      %p68 = scmp.eq.s32.totalorder %s14, 0
      %p69 = por %p67, %p68
      %p70 = scmp.ne.s32.totalorder %s62, %s64
      %p71 = scmp.eq.s32.totalorder %s19, 1
      %p72 = por %p70, %p71
      %p73 = scmp.ne.s32.totalorder %s64, %s65
      %p74 = scmp.eq.s32.totalorder %s19, 0
      %p75 = por %p73, %p74
      %p76 = scmp.ne.s32.totalorder %s64, %s65
      %p77 = scmp.eq.s32.totalorder %s20, 1
      %p78 = por %p76, %p77
      %p80 = scmp.ne.s32.totalorder %s65, %s79
      %p81 = scmp.eq.s32.totalorder %s20, 0
      %p82 = por %p80, %p81
      %s83 = ssub.s32 %s21, %s33
      %p84 = scmp.eq.s32.totalorder %s83, 0
      %s86 = sadd.s32 %s85, 1
      %s87 = scalar_select %p84, %s85, %s86
      %p90 = pneg %p84
      %p91 = scmp.eq.s32.totalorder %s14, 1
      %p92 = por %p90, %p91
      %p93 = scmp.ne.s32.totalorder %s85, %s88
      %p94 = scmp.eq.s32.totalorder %s14, 0
      %p95 = por %p93, %p94
      %p96 = scmp.ne.s32.totalorder %s85, %s88
      %p97 = scmp.eq.s32.totalorder %s19, 1
      %p98 = por %p96, %p97
      %p99 = scmp.ne.s32.totalorder %s88, %s89
      %p100 = scmp.eq.s32.totalorder %s19, 0
      %p101 = por %p99, %p100
      %p102 = scmp.ne.s32.totalorder %s88, %s89
      %p103 = scmp.eq.s32.totalorder %s20, 1
      %p104 = por %p102, %p103
      %p106 = scmp.ne.s32.totalorder %s89, %s105
      %p107 = scmp.eq.s32.totalorder %s20, 0
      %p108 = por %p106, %p107
      %s109 = ssub.s32 %s21, %s33
      %p110 = scmp.eq.s32.totalorder %s109, 0
      %s112 = sadd.s32 %s111, 1
      %s113 = scalar_select %p110, %s111, %s112
      %p116 = pneg %p110
      %p117 = scmp.eq.s32.totalorder %s14, 1
      %p118 = por %p116, %p117
      %p119 = scmp.ne.s32.totalorder %s111, %s114
      %p120 = scmp.eq.s32.totalorder %s14, 0
      %p121 = por %p119, %p120
      %p122 = scmp.ne.s32.totalorder %s111, %s114
      %p123 = scmp.eq.s32.totalorder %s19, 1
      %p124 = por %p122, %p123
      %p125 = scmp.ne.s32.totalorder %s114, %s115
      %p126 = scmp.eq.s32.totalorder %s19, 0
      %p127 = por %p125, %p126
      %p128 = scmp.ne.s32.totalorder %s114, %s115
      %p129 = scmp.eq.s32.totalorder %s20, 1
      %p130 = por %p128, %p129
      %p132 = scmp.ne.s32.totalorder %s115, %s131
      %p133 = scmp.eq.s32.totalorder %s20, 0
      %p134 = por %p132, %p133
      %s135 = ssub.s32 %s21, %s33
      %p136 = scmp.eq.s32.totalorder %s135, 0
      %s138 = sadd.s32 %s137, 1
      %s139 = scalar_select %p136, %s137, %s138
      %p142 = pneg %p136
      %p143 = scmp.eq.s32.totalorder %s14, 1
      %p144 = por %p142, %p143
      %p145 = scmp.ne.s32.totalorder %s137, %s140
      %p146 = scmp.eq.s32.totalorder %s14, 0
      %p147 = por %p145, %p146
      %p148 = scmp.ne.s32.totalorder %s137, %s140
      %p149 = scmp.eq.s32.totalorder %s19, 1
      %p150 = por %p148, %p149
      %p151 = scmp.ne.s32.totalorder %s140, %s141
      %p152 = scmp.eq.s32.totalorder %s19, 0
      %p153 = por %p151, %p152
      %p154 = scmp.ne.s32.totalorder %s140, %s141
      %p155 = scmp.eq.s32.totalorder %s20, 1
      %p156 = por %p154, %p155
      %p158 = scmp.ne.s32.totalorder %s141, %s157
      %p159 = scmp.eq.s32.totalorder %s20, 0
      %p160 = por %p158, %p159
      %p161 = scmp.le.s32.totalorder 1, %s14
      %p162 = scmp.lt.s32.totalorder %s14, 3
      %p163 = pnand %p161, %p162
      %p164 = pneg %p163
      // Predicated region
      $region9: #{tpu_custom_call.1} parent=5 // pred_check
        _
      $region10: #{tpu_custom_call.1} parent=5 // pred_check_branch
        %166 = sbr.rel (%p163) target = $region12
      $region11: #{tpu_custom_call.1} parent=5 // pred_region
        %s167 = ssub.s32 %s14, 1
        // Predicated region
        $region13: #{tpu_custom_call.1} parent=11 // pred_check
          %p168 = pneg %p75
        $region14: #{tpu_custom_call.1} parent=11 // pred_check_branch
          %170 = sbr.rel (%p168) target = $region16
        $region15: #{tpu_custom_call.1} parent=11 // pred_region
          _
        $region16: #{tpu_custom_call.1} parent=11 // pred_fallthru
          _
      $region12: #{tpu_custom_call.1} parent=5 // pred_fallthru
        _
      %p171 = scmp.lt.s32.totalorder %s14, 2
      // Predicated region
      $region17: #{tpu_custom_call.1} parent=5 // pred_check
        %p172 = pneg %p171
      $region18: #{tpu_custom_call.1} parent=5 // pred_check_branch
        %174 = sbr.rel (%p172) target = $region20
      $region19: #{tpu_custom_call.1} parent=5 // pred_region
        // Predicated region
        $region21: #{tpu_custom_call.1} parent=19 // pred_check
          %p175 = pneg %p48
        $region22: #{tpu_custom_call.1} parent=19 // pred_check_branch
          %177 = sbr.rel (%p175) target = $region24
        $region23: #{tpu_custom_call.1} parent=19 // pred_region
          %s178 = smul.u32 4, %s22
          %p179 = scmp.lt.s32.totalorder %s21, 1
          %s180 = scalar_select %p179, %s21, 1
          %p181 = scmp.lt.s32.totalorder %s178, 3
          %s182 = scalar_select %p181, %s178, 3
          %s183 = smul.addr %s182, 2
          %s184 = smul.addr %s180, 8
          %s185 = sadd.s32 %s183, %s184
          %s186 = smul.addr %s185, 8
          %s187 = scalar_lea.vmem %s0, %s186
          %s188 = smul.u32 4, %s22
        $region24: #{tpu_custom_call.1} parent=19 // pred_fallthru
          _
      $region20: #{tpu_custom_call.1} parent=5 // pred_fallthru
        _
      %p189 = scmp.le.s32.totalorder 1, %s14
      %p190 = scmp.lt.s32.totalorder %s14, 3
      %p191 = pnand %p189, %p190
      %p192 = pneg %p191
      // Predicated region
      $region25: #{tpu_custom_call.1} parent=5 // pred_check
        _
      $region26: #{tpu_custom_call.1} parent=5 // pred_check_branch
        %194 = sbr.rel (%p191) target = $region28
      $region27: #{tpu_custom_call.1} parent=5 // pred_region
        %s195 = ssub.s32 %s14, 1
        %s196 = smul.u32 4, %s24
        %p197 = scmp.lt.s32.totalorder %s23, 1
        %s198 = scalar_select %p197, %s23, 1
        %p199 = scmp.lt.s32.totalorder %s196, 3
        %s200 = scalar_select %p199, %s196, 3
        %s201 = smul.addr %s200, 2
        %s202 = smul.addr %s198, 8
        %s203 = sadd.s32 %s201, %s202
        %s204 = smul.addr %s203, 8
        %s205 = scalar_lea.vmem %s0, %s204
        %p206 = pneg %p54
        %p207 = pneg %p51
        %p208 = pneg %p75
        %p209 = pneg %p72
        %p210 = pneg %p101
        %p211 = pneg %p98
        %s212 = sand.u32 %s88, 1
        %s213 = scalar_lea.sflag [#allocation4], %s212
        %s214 = sand.u32 %s88, 1
        %s215 = smul.addr %s214, 16
        %s216 = scalar_lea.vmem [#allocation3], %s215
        %p217 = pneg %p127
        %p218 = pneg %p124
        %p219 = scmp.lt.s32.totalorder %s23, 1
        %s220 = scalar_select %p219, %s23, 1
        %s221 = scalar_lea.vmem %s3, %s220
        %p222 = pneg %p153
        %p223 = pneg %p150
        %p224 = scmp.lt.s32.totalorder %s23, 1
        %s225 = scalar_select %p224, %s23, 1
        %s226 = scalar_lea.vmem %s4, %s225
        %s227 = smul.u32 4, %s24
        %p228 = scmp.lt.s32.totalorder %s23, 1
        %s229 = scalar_select %p228, %s23, 1
        %p230 = scmp.lt.s32.totalorder %s227, 3
        %s231 = scalar_select %p230, %s227, 3
        %s232 = smul.addr %s231, 2
        %s233 = smul.addr %s229, 8
        %s234 = sadd.s32 %s232, %s233
        %s235 = smul.addr %s234, 8
        %s236 = scalar_lea.vmem %s0, %s235
        %s237 = smul.u32 4, %s24
        %p238 = scmp.lt.s32.totalorder %s23, 1
        %s239 = scalar_select %p238, %s23, 1
        %s240 = scalar_lea.vmem %s3, %s239
        %p241 = scmp.lt.s32.totalorder %s23, 1
        %s242 = scalar_select %p241, %s23, 1
        %s243 = scalar_lea.vmem %s4, %s242
        %p245 = scmp.eq.s32.totalorder %s24, 0
        // Predicated region
        $region29: #{tpu_custom_call.1} parent=27 // pred_check
          %p246 = pneg %p245
        $region30: #{tpu_custom_call.1} parent=27 // pred_check_branch
          %248 = sbr.rel (%p246) target = $region32
        $region31: #{tpu_custom_call.1} parent=27 // pred_region
          %vm249 = vcmask 130048
          %250 = vst.msk [vmem:[#allocation2] sm:$0xff] %vm249, 0.0
          %251 = vst.msk [vmem:[#allocation2 + $0x8] sm:$0xff] %vm249, 0.0
          %vm252 = vcmask 261248
          %253 = vst.msk [vmem:[#allocation2] sm:$0xff] %vm252, -inf
          %254 = vst.msk [vmem:[#allocation2 + $0x8] sm:$0xff] %vm252, -inf
        $region32: #{tpu_custom_call.1} parent=27 // pred_fallthru
          _
        %v255 = vld [vmem:[%s236] sm:$0xff]
        %v256 = vld [vmem:[%s236 + $0x8] sm:$0xff]
        %v257 = vld [vmem:[%s236 + $0x10] sm:$0xff]
        %v258 = vld [vmem:[%s236 + $0x18] sm:$0xff]
        %v259 = vld [vmem:[%s236 + $0x20] sm:$0xff]
        %v260 = vld [vmem:[%s236 + $0x28] sm:$0xff]
        %v261 = vld [vmem:[%s236 + $0x30] sm:$0xff]
        %v262 = vld [vmem:[%s236 + $0x38] sm:$0xff]
        %v263 = vld [vmem:[#allocation2] sm:$0xff]
        %v264 = vld [vmem:[#allocation2 + $0x8] sm:$0xff]
        %vm265 = vcmask 130048
        %v266 = vsel %vm265, %v255, 0.0
        %v267 = vsel %vm265, %v257, 0.0
        %v268 = vadd.f32 %v266, %v267
        %v269 = vsel %vm265, %v259, 0.0
        %v270 = vadd.f32 %v268, %v269
        %v271 = vsel %vm265, %v261, 0.0
        %v272 = vadd.f32 %v270, %v271
        %v273 = vsel %vm265, %v256, 0.0
        %v274 = vsel %vm265, %v258, 0.0
        %v275 = vadd.f32 %v273, %v274
        %v276 = vsel %vm265, %v260, 0.0
        %v277 = vadd.f32 %v275, %v276
        %v278 = vsel %vm265, %v262, 0.0
        %v279 = vadd.f32 %v277, %v278
        %v280 = vadd.f32 %v263, %v272
        %v281 = vadd.f32 %v264, %v279
        %282 = vst.msk [vmem:[#allocation2] sm:$0xff] %vm265, %v280
        %283 = vst.msk [vmem:[#allocation2 + $0x8] sm:$0xff] %vm265, %v281
        %v284 = vld [vmem:[#allocation2] sm:$0xff]
        %v285 = vld [vmem:[#allocation2 + $0x8] sm:$0xff]
        %v286 = vsel %vm265, %v255, -inf
        %v287 = vsel %vm265, %v257, -inf
        %v288 = vsel %vm265, %v259, -inf
        %v289 = vmax.f32 %v286, %v288
        %v290 = vsel %vm265, %v261, -inf
        %v291 = vmax.f32 %v287, %v290
        %v292 = vmax.f32 %v289, %v291
        %v293 = vsel %vm265, %v256, -inf
        %v294 = vsel %vm265, %v258, -inf
        %v295 = vsel %vm265, %v260, -inf
        %v296 = vmax.f32 %v293, %v295
        %v297 = vsel %vm265, %v262, -inf
        %v298 = vmax.f32 %v294, %v297
        %v299 = vmax.f32 %v296, %v298
        %302 = vrot.lane.b32.xlu0 %v292, 16
        %v303 = vpop.permute.xlu0 %302
        %304 = vrot.lane.b32.xlu0 %v299, 16
        %v305 = vpop.permute.xlu0 %304
        %v308 = vmax.f32 %v284, %v303
        %v309 = vmax.f32 %v285, %v305
        %vm310 = vcmask 261248
        %311 = vst.msk [vmem:[#allocation2] sm:$0xff] %vm310, %v308
        %312 = vst.msk [vmem:[#allocation2 + $0x8] sm:$0xff] %vm310, %v309
        // Predicated region
        $region33: #{tpu_custom_call.1} parent=27 // pred_check
          %p313 = pneg %p245
        $region34: #{tpu_custom_call.1} parent=27 // pred_check_branch
          %315 = sbr.rel (%p313) target = $region36
        $region35: #{tpu_custom_call.1} parent=27 // pred_region
          %v316 = vld [vmem:[#allocation2] sm:$0xff]
          %v317 = vld [vmem:[#allocation2 + $0x8] sm:$0xff]
          %v318 = vpack.c.bf16 %v317, %v316
          %v319 = vlaneseq
          %v320 = vshrl.u32 %v319, 7
          %v321 = vadd.s32 %v320, 8
          %v322 = vld [vmem:[%s1] sm:$0xf]
          %v323 = vld [vmem:[%s1 + $0x4] sm:$0xf]
          %v324 = vld [vmem:[%s1 + $0x8] sm:$0xf]
          %v325 = vld [vmem:[%s1 + $0xc] sm:$0xf]
          %v330 = vunpack.c.l.b16 %v322
          %v331 = vunpack.c.l.b16 %v323
          %v332 = vunpack.c.l.b16 %v324
          %v333 = vunpack.c.l.b16 %v325
          %v334 = vpack.c.b16 %v331, %v330
          %v335 = vpack.c.b16 %v333, %v332
          %vm338 = vcmask 261120
          %v340 = vsel %vm338, %v318, 0
          %342 = vmatprep.subr.bf16.mxu0 0
          %343 = vmatpush1.bf16.msra.mxu0 %v334
          %344 = vmatprep.subr.bf16.mxu0 0
          %345 = vmatpush1.bf16.msra.mxu0 %v335
          %346 = vmatprep.subr.bf16.mxu0 0
          %347 = vmatpush1.bf16.msra.mxu0 0
          %348 = vmatprep.subr.bf16.mxu0 0
          %349 = vmatpush1.bf16.msra.mxu0 0
          %350 = vmatprep.subr.bf16.mxu0 0
          %351 = vmatpush1.bf16.msra.mxu0 0
          %352 = vmatprep.subr.bf16.mxu0 0
          %353 = vmatpush1.bf16.msra.mxu0 0
          %354 = vmatprep.subr.bf16.mxu0 0
          %355 = vmatpush1.bf16.msra.mxu0 0
          %356 = vmatprep.subr.bf16.mxu0 0
          %357 = vmatpush1.bf16.msra.mxu0 0
          %358 = vmatprep.subr.bf16.mxu0 0
          %359 = vmatpush1.bf16.msra.mxu0 0
          %360 = vmatprep.subr.bf16.mxu0 0
          %361 = vmatpush1.bf16.msra.mxu0 0
          %362 = vmatprep.subr.bf16.mxu0 0
          %363 = vmatpush1.bf16.msra.mxu0 0
          %364 = vmatprep.subr.bf16.mxu0 0
          %365 = vmatpush1.bf16.msra.mxu0 0
          %366 = vmatprep.subr.bf16.mxu0 0
          %367 = vmatpush1.bf16.msra.mxu0 0
          %368 = vmatprep.subr.bf16.mxu0 0
          %369 = vmatpush1.bf16.msra.mxu0 0
          %370 = vmatprep.subr.bf16.mxu0 0
          %371 = vmatpush1.bf16.msra.mxu0 0
          %372 = vmatprep.subr.bf16.mxu0 0
          %373 = vmatpush1.bf16.msra.mxu0 0
          %374 = vmatprep.mubr.bf16.mxu0 0
          %375 = vmatmul.mubr.bf16.gmra.mrb[0].mxu0 %v340
          %v376 = vpop.f32.mrb[0].mxu0
          %v377 = vadd.f32 0.0, %v376
          %v378 = vpop.f32.mrb[0].mxu0
          %v379 = vpop.f32.mrb[0].mxu0
          %v380 = vadd.f32 0.0, %v379
          %v381 = vpop.f32.mrb[0].mxu0
          %382 = vdwg.mxu0
          %v383 = vrot.slane %v377, 5
          %v384 = vrot.slane %v380, 5
          %vm385 = vcmp.lt.s32.totalorder %v320, 3
          %v386 = vsel %vm385, %v383, %v384
          %v387 = vsel %vm385, %v384, %v383
          %v388 = vadd.s32 %v320, 4294967293
          %v389 = vadd.s32 %v321, 4294967293
          %vm390 = vcmp.ge.s32.totalorder %v388, 0
          %vm391 = vcmp.ge.s32.totalorder %v389, 0
          %vm392 = vcmp.lt.s32.totalorder %v388, 16
          %vm393 = vcmp.lt.s32.totalorder %v389, 16
          %vm394 = vmand %vm390, %vm392
          %vm395 = vmand %vm391, %vm393
          %v396 = vsel %vm394, %v387, 0.0
          %v397 = vsel %vm395, %v386, 0.0
          %v398 = vadd.f32 %v396, 0.0
          %v399 = vadd.f32 %v397, 0.0
          %s400 = scalar_lea.vmem %s1, 16
          %v401 = vld [vmem:[%s400] sm:$0xf]
          %v402 = vld [vmem:[%s400 + $0x4] sm:$0xf]
          %v403 = vld [vmem:[%s400 + $0x8] sm:$0xf]
          %v404 = vld [vmem:[%s400 + $0xc] sm:$0xf]
          %v409 = vunpack.c.l.b16 %v401
          %v410 = vunpack.c.l.b16 %v402
          %v411 = vunpack.c.l.b16 %v403
          %v412 = vunpack.c.l.b16 %v404
          %v413 = vpack.c.b16 %v410, %v409
          %v414 = vpack.c.b16 %v412, %v411
          %417 = vmatprep.subr.bf16.mxu0 0
          %418 = vmatpush1.bf16.msra.mxu0 %v413
          %419 = vmatprep.subr.bf16.mxu0 0
          %420 = vmatpush1.bf16.msra.mxu0 %v414
          %421 = vmatprep.subr.bf16.mxu0 0
          %422 = vmatpush1.bf16.msra.mxu0 0
          %423 = vmatprep.subr.bf16.mxu0 0
          %424 = vmatpush1.bf16.msra.mxu0 0
          %425 = vmatprep.subr.bf16.mxu0 0
          %426 = vmatpush1.bf16.msra.mxu0 0
          %427 = vmatprep.subr.bf16.mxu0 0
          %428 = vmatpush1.bf16.msra.mxu0 0
          %429 = vmatprep.subr.bf16.mxu0 0
          %430 = vmatpush1.bf16.msra.mxu0 0
          %431 = vmatprep.subr.bf16.mxu0 0
          %432 = vmatpush1.bf16.msra.mxu0 0
          %433 = vmatprep.subr.bf16.mxu0 0
          %434 = vmatpush1.bf16.msra.mxu0 0
          %435 = vmatprep.subr.bf16.mxu0 0
          %436 = vmatpush1.bf16.msra.mxu0 0
          %437 = vmatprep.subr.bf16.mxu0 0
          %438 = vmatpush1.bf16.msra.mxu0 0
          %439 = vmatprep.subr.bf16.mxu0 0
          %440 = vmatpush1.bf16.msra.mxu0 0
          %441 = vmatprep.subr.bf16.mxu0 0
          %442 = vmatpush1.bf16.msra.mxu0 0
          %443 = vmatprep.subr.bf16.mxu0 0
          %444 = vmatpush1.bf16.msra.mxu0 0
          %445 = vmatprep.subr.bf16.mxu0 0
          %446 = vmatpush1.bf16.msra.mxu0 0
          %447 = vmatprep.subr.bf16.mxu0 0
          %448 = vmatpush1.bf16.msra.mxu0 0
          %449 = vmatprep.mubr.bf16.mxu0 0
          %450 = vmatmul.mubr.bf16.gmra.mrb[0].mxu0 %v340
          %v451 = vpop.f32.mrb[0].mxu0
          %v452 = vadd.f32 0.0, %v451
          %v453 = vpop.f32.mrb[0].mxu0
          %v454 = vpop.f32.mrb[0].mxu0
          %v455 = vadd.f32 0.0, %v454
          %v456 = vpop.f32.mrb[0].mxu0
          %457 = vdwg.mxu0
          %v458 = vrot.slane %v452, 6
          %v459 = vrot.slane %v455, 6
          %vm460 = vcmp.lt.s32.totalorder %v320, 2
          %v461 = vsel %vm460, %v458, %v459
          %v462 = vsel %vm460, %v459, %v458
          %v463 = vadd.s32 %v320, 4294967294
          %v464 = vadd.s32 %v321, 4294967294
          %vm465 = vcmp.ge.s32.totalorder %v463, 0
          %vm466 = vcmp.ge.s32.totalorder %v464, 0
          %vm467 = vcmp.lt.s32.totalorder %v463, 16
          %vm468 = vcmp.lt.s32.totalorder %v464, 16
          %vm469 = vmand %vm465, %vm467
          %vm470 = vmand %vm466, %vm468
          %v471 = vsel %vm469, %v462, 0.0
          %v472 = vsel %vm470, %v461, 0.0
          %v473 = vadd.f32 %v398, %v471
          %v474 = vadd.f32 %v399, %v472
          %s475 = scalar_lea.vmem %s1, 32
          %v476 = vld [vmem:[%s475] sm:$0xf]
          %v477 = vld [vmem:[%s475 + $0x4] sm:$0xf]
          %v478 = vld [vmem:[%s475 + $0x8] sm:$0xf]
          %v479 = vld [vmem:[%s475 + $0xc] sm:$0xf]
          %v484 = vunpack.c.l.b16 %v476
          %v485 = vunpack.c.l.b16 %v477
          %v486 = vunpack.c.l.b16 %v478
          %v487 = vunpack.c.l.b16 %v479
          %v488 = vpack.c.b16 %v485, %v484
          %v489 = vpack.c.b16 %v487, %v486
          %492 = vmatprep.subr.bf16.mxu0 0
          %493 = vmatpush1.bf16.msra.mxu0 %v488
          %494 = vmatprep.subr.bf16.mxu0 0
          %495 = vmatpush1.bf16.msra.mxu0 %v489
          %496 = vmatprep.subr.bf16.mxu0 0
          %497 = vmatpush1.bf16.msra.mxu0 0
          %498 = vmatprep.subr.bf16.mxu0 0
          %499 = vmatpush1.bf16.msra.mxu0 0
          %500 = vmatprep.subr.bf16.mxu0 0
          %501 = vmatpush1.bf16.msra.mxu0 0
          %502 = vmatprep.subr.bf16.mxu0 0
          %503 = vmatpush1.bf16.msra.mxu0 0
          %504 = vmatprep.subr.bf16.mxu0 0
          %505 = vmatpush1.bf16.msra.mxu0 0
          %506 = vmatprep.subr.bf16.mxu0 0
          %507 = vmatpush1.bf16.msra.mxu0 0
          %508 = vmatprep.subr.bf16.mxu0 0
          %509 = vmatpush1.bf16.msra.mxu0 0
          %510 = vmatprep.subr.bf16.mxu0 0
          %511 = vmatpush1.bf16.msra.mxu0 0
          %512 = vmatprep.subr.bf16.mxu0 0
          %513 = vmatpush1.bf16.msra.mxu0 0
          %514 = vmatprep.subr.bf16.mxu0 0
          %515 = vmatpush1.bf16.msra.mxu0 0
          %516 = vmatprep.subr.bf16.mxu0 0
          %517 = vmatpush1.bf16.msra.mxu0 0
          %518 = vmatprep.subr.bf16.mxu0 0
          %519 = vmatpush1.bf16.msra.mxu0 0
          %520 = vmatprep.subr.bf16.mxu0 0
          %521 = vmatpush1.bf16.msra.mxu0 0
          %522 = vmatprep.subr.bf16.mxu0 0
          %523 = vmatpush1.bf16.msra.mxu0 0
          %524 = vmatprep.mubr.bf16.mxu0 0
          %525 = vmatmul.mubr.bf16.gmra.mrb[0].mxu0 %v340
          %v526 = vpop.f32.mrb[0].mxu0
          %v527 = vadd.f32 0.0, %v526
          %v528 = vpop.f32.mrb[0].mxu0
          %v529 = vpop.f32.mrb[0].mxu0
          %v530 = vadd.f32 0.0, %v529
          %v531 = vpop.f32.mrb[0].mxu0
          %532 = vdwg.mxu0
          %v533 = vrot.slane %v527, 7
          %v534 = vrot.slane %v530, 7
          %vm535 = vcmp.lt.s32.totalorder %v320, 1
          %v536 = vsel %vm535, %v533, %v534
          %v537 = vsel %vm535, %v534, %v533
          %v538 = vadd.s32 %v320, 4294967295
          %v539 = vadd.s32 %v321, 4294967295
          %vm540 = vcmp.ge.s32.totalorder %v538, 0
          %vm541 = vcmp.ge.s32.totalorder %v539, 0
          %vm542 = vcmp.lt.s32.totalorder %v538, 16
          %vm543 = vcmp.lt.s32.totalorder %v539, 16
          %vm544 = vmand %vm540, %vm542
          %vm545 = vmand %vm541, %vm543
          %v546 = vsel %vm544, %v537, 0.0
          %v547 = vsel %vm545, %v536, 0.0
          %v548 = vadd.f32 %v473, %v546
          %v549 = vadd.f32 %v474, %v547
          %s550 = scalar_lea.vmem %s1, 48
          %v551 = vld [vmem:[%s550] sm:$0xf]
          %v552 = vld [vmem:[%s550 + $0x4] sm:$0xf]
          %v553 = vld [vmem:[%s550 + $0x8] sm:$0xf]
          %v554 = vld [vmem:[%s550 + $0xc] sm:$0xf]
          %v559 = vunpack.c.l.b16 %v551
          %v560 = vunpack.c.l.b16 %v552
          %v561 = vunpack.c.l.b16 %v553
          %v562 = vunpack.c.l.b16 %v554
          %v563 = vpack.c.b16 %v560, %v559
          %v564 = vpack.c.b16 %v562, %v561
          %567 = vmatprep.subr.bf16.mxu0 0
          %568 = vmatpush1.bf16.msra.mxu0 %v563
          %569 = vmatprep.subr.bf16.mxu0 0
          %570 = vmatpush1.bf16.msra.mxu0 %v564
          %571 = vmatprep.subr.bf16.mxu0 0
          %572 = vmatpush1.bf16.msra.mxu0 0
          %573 = vmatprep.subr.bf16.mxu0 0
          %574 = vmatpush1.bf16.msra.mxu0 0
          %575 = vmatprep.subr.bf16.mxu0 0
          %576 = vmatpush1.bf16.msra.mxu0 0
          %577 = vmatprep.subr.bf16.mxu0 0
          %578 = vmatpush1.bf16.msra.mxu0 0
          %579 = vmatprep.subr.bf16.mxu0 0
          %580 = vmatpush1.bf16.msra.mxu0 0
          %581 = vmatprep.subr.bf16.mxu0 0
          %582 = vmatpush1.bf16.msra.mxu0 0
          %583 = vmatprep.subr.bf16.mxu0 0
          %584 = vmatpush1.bf16.msra.mxu0 0
          %585 = vmatprep.subr.bf16.mxu0 0
          %586 = vmatpush1.bf16.msra.mxu0 0
          %587 = vmatprep.subr.bf16.mxu0 0
          %588 = vmatpush1.bf16.msra.mxu0 0
          %589 = vmatprep.subr.bf16.mxu0 0
          %590 = vmatpush1.bf16.msra.mxu0 0
          %591 = vmatprep.subr.bf16.mxu0 0
          %592 = vmatpush1.bf16.msra.mxu0 0
          %593 = vmatprep.subr.bf16.mxu0 0
          %594 = vmatpush1.bf16.msra.mxu0 0
          %595 = vmatprep.subr.bf16.mxu0 0
          %596 = vmatpush1.bf16.msra.mxu0 0
          %597 = vmatprep.subr.bf16.mxu0 0
          %598 = vmatpush1.bf16.msra.mxu0 0
          %599 = vmatprep.mubr.bf16.mxu0 0
          %600 = vmatmul.mubr.bf16.gmra.mrb[0].mxu0 %v340
          %v601 = vpop.f32.mrb[0].mxu0
          %v602 = vadd.f32 0.0, %v601
          %v603 = vpop.f32.mrb[0].mxu0
          %v604 = vpop.f32.mrb[0].mxu0
          %v605 = vadd.f32 0.0, %v604
          %v606 = vpop.f32.mrb[0].mxu0
          %607 = vdwg.mxu0
          %v608 = vadd.f32 %v548, %v602
          %v609 = vadd.f32 %v549, %v605
          %s610 = scalar_lea.vmem %s1, 64
          %v611 = vld [vmem:[%s610] sm:$0xf]
          %v612 = vld [vmem:[%s610 + $0x4] sm:$0xf]
          %v613 = vld [vmem:[%s610 + $0x8] sm:$0xf]
          %v614 = vld [vmem:[%s610 + $0xc] sm:$0xf]
          %v619 = vunpack.c.l.b16 %v611
          %v620 = vunpack.c.l.b16 %v612
          %v621 = vunpack.c.l.b16 %v613
          %v622 = vunpack.c.l.b16 %v614
          %v623 = vpack.c.b16 %v620, %v619
          %v624 = vpack.c.b16 %v622, %v621
          %627 = vmatprep.subr.bf16.mxu0 0
          %628 = vmatpush1.bf16.msra.mxu0 %v623
          %629 = vmatprep.subr.bf16.mxu0 0
          %630 = vmatpush1.bf16.msra.mxu0 %v624
          %631 = vmatprep.subr.bf16.mxu0 0
          %632 = vmatpush1.bf16.msra.mxu0 0
          %633 = vmatprep.subr.bf16.mxu0 0
          %634 = vmatpush1.bf16.msra.mxu0 0
          %635 = vmatprep.subr.bf16.mxu0 0
          %636 = vmatpush1.bf16.msra.mxu0 0
          %637 = vmatprep.subr.bf16.mxu0 0
          %638 = vmatpush1.bf16.msra.mxu0 0
          %639 = vmatprep.subr.bf16.mxu0 0
          %640 = vmatpush1.bf16.msra.mxu0 0
          %641 = vmatprep.subr.bf16.mxu0 0
          %642 = vmatpush1.bf16.msra.mxu0 0
          %643 = vmatprep.subr.bf16.mxu0 0
          %644 = vmatpush1.bf16.msra.mxu0 0
          %645 = vmatprep.subr.bf16.mxu0 0
          %646 = vmatpush1.bf16.msra.mxu0 0
          %647 = vmatprep.subr.bf16.mxu0 0
          %648 = vmatpush1.bf16.msra.mxu0 0
          %649 = vmatprep.subr.bf16.mxu0 0
          %650 = vmatpush1.bf16.msra.mxu0 0
          %651 = vmatprep.subr.bf16.mxu0 0
          %652 = vmatpush1.bf16.msra.mxu0 0
          %653 = vmatprep.subr.bf16.mxu0 0
          %654 = vmatpush1.bf16.msra.mxu0 0
          %655 = vmatprep.subr.bf16.mxu0 0
          %656 = vmatpush1.bf16.msra.mxu0 0
          %657 = vmatprep.subr.bf16.mxu0 0
          %658 = vmatpush1.bf16.msra.mxu0 0
          %659 = vmatprep.mubr.bf16.mxu0 0
          %660 = vmatmul.mubr.bf16.gmra.mrb[0].mxu0 %v340
          %v661 = vpop.f32.mrb[0].mxu0
          %v662 = vadd.f32 0.0, %v661
          %v663 = vpop.f32.mrb[0].mxu0
          %v664 = vpop.f32.mrb[0].mxu0
          %v665 = vadd.f32 0.0, %v664
          %v666 = vpop.f32.mrb[0].mxu0
          %667 = vdwg.mxu0
          %v668 = vrot.slane %v662, 1
          %v669 = vrot.slane %v665, 1
          %vm670 = vcmp.lt.s32.totalorder %v320, 7
          %v671 = vsel %vm670, %v668, %v669
          %v672 = vsel %vm670, %v669, %v668
          %v673 = vadd.s32 %v320, 1
          %v674 = vadd.s32 %v321, 1
          %vm675 = vcmp.ge.s32.totalorder %v673, 0
          %vm676 = vcmp.ge.s32.totalorder %v674, 0
          %vm677 = vcmp.lt.s32.totalorder %v673, 16
          %vm678 = vcmp.lt.s32.totalorder %v674, 16
          %vm679 = vmand %vm675, %vm677
          %vm680 = vmand %vm676, %vm678
          %v681 = vsel %vm679, %v671, 0.0
          %v682 = vsel %vm680, %v672, 0.0
          %v683 = vadd.f32 %v608, %v681
          %v684 = vadd.f32 %v609, %v682
          %s685 = scalar_lea.vmem %s1, 80
          %v686 = vld [vmem:[%s685] sm:$0xf]
          %v687 = vld [vmem:[%s685 + $0x4] sm:$0xf]
          %v688 = vld [vmem:[%s685 + $0x8] sm:$0xf]
          %v689 = vld [vmem:[%s685 + $0xc] sm:$0xf]
          %v694 = vunpack.c.l.b16 %v686
          %v695 = vunpack.c.l.b16 %v687
          %v696 = vunpack.c.l.b16 %v688
          %v697 = vunpack.c.l.b16 %v689
          %v698 = vpack.c.b16 %v695, %v694
          %v699 = vpack.c.b16 %v697, %v696
          %702 = vmatprep.subr.bf16.mxu0 0
          %703 = vmatpush1.bf16.msra.mxu0 %v698
          %704 = vmatprep.subr.bf16.mxu0 0
          %705 = vmatpush1.bf16.msra.mxu0 %v699
          %706 = vmatprep.subr.bf16.mxu0 0
          %707 = vmatpush1.bf16.msra.mxu0 0
          %708 = vmatprep.subr.bf16.mxu0 0
          %709 = vmatpush1.bf16.msra.mxu0 0
          %710 = vmatprep.subr.bf16.mxu0 0
          %711 = vmatpush1.bf16.msra.mxu0 0
          %712 = vmatprep.subr.bf16.mxu0 0
          %713 = vmatpush1.bf16.msra.mxu0 0
          %714 = vmatprep.subr.bf16.mxu0 0
          %715 = vmatpush1.bf16.msra.mxu0 0
          %716 = vmatprep.subr.bf16.mxu0 0
          %717 = vmatpush1.bf16.msra.mxu0 0
          %718 = vmatprep.subr.bf16.mxu0 0
          %719 = vmatpush1.bf16.msra.mxu0 0
          %720 = vmatprep.subr.bf16.mxu0 0
          %721 = vmatpush1.bf16.msra.mxu0 0
          %722 = vmatprep.subr.bf16.mxu0 0
          %723 = vmatpush1.bf16.msra.mxu0 0
          %724 = vmatprep.subr.bf16.mxu0 0
          %725 = vmatpush1.bf16.msra.mxu0 0
          %726 = vmatprep.subr.bf16.mxu0 0
          %727 = vmatpush1.bf16.msra.mxu0 0
          %728 = vmatprep.subr.bf16.mxu0 0
          %729 = vmatpush1.bf16.msra.mxu0 0
          %730 = vmatprep.subr.bf16.mxu0 0
          %731 = vmatpush1.bf16.msra.mxu0 0
          %732 = vmatprep.subr.bf16.mxu0 0
          %733 = vmatpush1.bf16.msra.mxu0 0
          %734 = vmatprep.mubr.bf16.mxu0 0
          %735 = vmatmul.mubr.bf16.gmra.mrb[0].mxu0 %v340
          %v736 = vpop.f32.mrb[0].mxu0
          %v737 = vadd.f32 0.0, %v736
          %v738 = vpop.f32.mrb[0].mxu0
          %v739 = vpop.f32.mrb[0].mxu0
          %v740 = vadd.f32 0.0, %v739
          %v741 = vpop.f32.mrb[0].mxu0
          %742 = vdwg.mxu0
          %v743 = vrot.slane %v737, 2
          %v744 = vrot.slane %v740, 2
          %vm745 = vcmp.lt.s32.totalorder %v320, 6
          %v746 = vsel %vm745, %v743, %v744
          %v747 = vsel %vm745, %v744, %v743
          %v748 = vadd.s32 %v320, 2
          %v749 = vadd.s32 %v321, 2
          %vm750 = vcmp.ge.s32.totalorder %v748, 0
          %vm751 = vcmp.ge.s32.totalorder %v749, 0
          %vm752 = vcmp.lt.s32.totalorder %v748, 16
          %vm753 = vcmp.lt.s32.totalorder %v749, 16
          %vm754 = vmand %vm750, %vm752
          %vm755 = vmand %vm751, %vm753
          %v756 = vsel %vm754, %v746, 0.0
          %v757 = vsel %vm755, %v747, 0.0
          %v758 = vadd.f32 %v683, %v756
          %v759 = vadd.f32 %v684, %v757
          %s760 = scalar_lea.vmem %s1, 96
          %v761 = vld [vmem:[%s760] sm:$0xf]
          %v762 = vld [vmem:[%s760 + $0x4] sm:$0xf]
          %v763 = vld [vmem:[%s760 + $0x8] sm:$0xf]
          %v764 = vld [vmem:[%s760 + $0xc] sm:$0xf]
          %v769 = vunpack.c.l.b16 %v761
          %v770 = vunpack.c.l.b16 %v762
          %v771 = vunpack.c.l.b16 %v763
          %v772 = vunpack.c.l.b16 %v764
          %v773 = vpack.c.b16 %v770, %v769
          %v774 = vpack.c.b16 %v772, %v771
          %777 = vmatprep.subr.bf16.mxu0 0
          %778 = vmatpush1.bf16.msra.mxu0 %v773
          %779 = vmatprep.subr.bf16.mxu0 0
          %780 = vmatpush1.bf16.msra.mxu0 %v774
          %781 = vmatprep.subr.bf16.mxu0 0
          %782 = vmatpush1.bf16.msra.mxu0 0
          %783 = vmatprep.subr.bf16.mxu0 0
          %784 = vmatpush1.bf16.msra.mxu0 0
          %785 = vmatprep.subr.bf16.mxu0 0
          %786 = vmatpush1.bf16.msra.mxu0 0
          %787 = vmatprep.subr.bf16.mxu0 0
          %788 = vmatpush1.bf16.msra.mxu0 0
          %789 = vmatprep.subr.bf16.mxu0 0
          %790 = vmatpush1.bf16.msra.mxu0 0
          %791 = vmatprep.subr.bf16.mxu0 0
          %792 = vmatpush1.bf16.msra.mxu0 0
          %793 = vmatprep.subr.bf16.mxu0 0
          %794 = vmatpush1.bf16.msra.mxu0 0
          %795 = vmatprep.subr.bf16.mxu0 0
          %796 = vmatpush1.bf16.msra.mxu0 0
          %797 = vmatprep.subr.bf16.mxu0 0
          %798 = vmatpush1.bf16.msra.mxu0 0
          %799 = vmatprep.subr.bf16.mxu0 0
          %800 = vmatpush1.bf16.msra.mxu0 0
          %801 = vmatprep.subr.bf16.mxu0 0
          %802 = vmatpush1.bf16.msra.mxu0 0
          %803 = vmatprep.subr.bf16.mxu0 0
          %804 = vmatpush1.bf16.msra.mxu0 0
          %805 = vmatprep.subr.bf16.mxu0 0
          %806 = vmatpush1.bf16.msra.mxu0 0
          %807 = vmatprep.subr.bf16.mxu0 0
          %808 = vmatpush1.bf16.msra.mxu0 0
          %809 = vmatprep.mubr.bf16.mxu0 0
          %810 = vmatmul.mubr.bf16.gmra.mrb[0].mxu0 %v340
          %v811 = vpop.f32.mrb[0].mxu0
          %v812 = vadd.f32 0.0, %v811
          %v813 = vpop.f32.mrb[0].mxu0
          %v814 = vpop.f32.mrb[0].mxu0
          %v815 = vadd.f32 0.0, %v814
          %v816 = vpop.f32.mrb[0].mxu0
          %817 = vdwg.mxu0
          %v818 = vrot.slane %v812, 3
          %v819 = vrot.slane %v815, 3
          %vm820 = vcmp.lt.s32.totalorder %v320, 5
          %v821 = vsel %vm820, %v818, %v819
          %v822 = vsel %vm820, %v819, %v818
          %v823 = vadd.s32 %v320, 3
          %v824 = vadd.s32 %v321, 3
          %vm825 = vcmp.ge.s32.totalorder %v823, 0
          %vm826 = vcmp.ge.s32.totalorder %v824, 0
          %vm827 = vcmp.lt.s32.totalorder %v823, 16
          %vm828 = vcmp.lt.s32.totalorder %v824, 16
          %vm829 = vmand %vm825, %vm827
          %vm830 = vmand %vm826, %vm828
          %v831 = vsel %vm829, %v821, 0.0
          %v832 = vsel %vm830, %v822, 0.0
          %v833 = vadd.f32 %v758, %v831
          %v834 = vadd.f32 %v759, %v832
          %835 = vst.msk [vmem:[%s216] sm:$0xff] %vm265, %v833
          %836 = vst.msk [vmem:[%s216 + $0x8] sm:$0xff] %vm265, %v834
          %v837 = vsel %vm265, %v833, 0.0
          %838 = vadd.xlane.f32.xlu0 %v837
          %v839 = vpop.xlane.xlu0 %838
          %v840 = vsel %vm265, %v834, 0.0
          %841 = vadd.xlane.f32.xlu0 %v840
          %v842 = vpop.xlane.xlu0 %841
          %v843 = vadd.f32 %v839, %v842
          %v844 = vrot.slane %v843, 4
          %v845 = vadd.f32 %v843, %v844
          %v846 = vrot.slane %v845, 2
          %v847 = vadd.f32 %v845, %v846
          %v848 = vrot.slane %v847, 1
          %v849 = vadd.f32 %v847, %v848
          %vm850 = vcmask 0
          %851 = vst.msk [vmem:[%s240] sm:$0x1] %vm850, %v849
          %v852 = vmul.f32 %v833, %v833
          %v853 = vmul.f32 %v834, %v834
          %v854 = vsel %vm265, %v852, 0.0
          %855 = vadd.xlane.f32.xlu0 %v854
          %v856 = vpop.xlane.xlu0 %855
          %v857 = vsel %vm265, %v853, 0.0
          %858 = vadd.xlane.f32.xlu0 %v857
          %v859 = vpop.xlane.xlu0 %858
          %v860 = vadd.f32 %v856, %v859
          %v861 = vrot.slane %v860, 4
          %v862 = vadd.f32 %v860, %v861
          %v863 = vrot.slane %v862, 2
          %v864 = vadd.f32 %v862, %v863
          %v865 = vrot.slane %v864, 1
          %v866 = vadd.f32 %v864, %v865
          %867 = vst.msk [vmem:[%s243] sm:$0x1] %vm850, %v866
        $region36: #{tpu_custom_call.1} parent=27 // pred_fallthru
          _
        %s868 = sand.u32 %s88, 1
        %s869 = scalar_lea.sflag [#allocation4], %s868
        %s870 = sand.u32 %s88, 1
        %s871 = smul.addr %s870, 16
        %s872 = scalar_lea.vmem [#allocation3], %s871
        %p873 = scmp.lt.s32.totalorder %s23, 1
        %s874 = scalar_select %p873, %s23, 1
        %s875 = scalar_lea.vmem %s3, %s874
        %p876 = scmp.lt.s32.totalorder %s23, 1
        %s877 = scalar_select %p876, %s23, 1
        %s878 = scalar_lea.vmem %s4, %s877
        // Predicated region
        $region37: #{tpu_custom_call.1} parent=27 // pred_check
          %p879 = pneg %p98
        $region38: #{tpu_custom_call.1} parent=27 // pred_check_branch
          %881 = sbr.rel (%p879) target = $region40
        $region39: #{tpu_custom_call.1} parent=27 // pred_region
          %s883 = ssub.s32 256, 256
          %884 = vsyncadd %s869, %s883
          %s885 = smul.addr %s23, 2
          %s886 = smul.addr %s885, 128
          %s887 = scalar_lea.hbm %s2, %s886
          %s888 = sshll.u32 %s872, 4
          %s889 = int_to_ptr.vmem [resolvable:$true] %s888
          %894 = dma.vmem_to_hbm [thread:$0]  %s889, 256, %s887, %s869, 128, 128, 8
        $region40: #{tpu_custom_call.1} parent=27 // pred_fallthru
          _
        // Predicated region
        $region41: #{tpu_custom_call.1} parent=27 // pred_check
          %p895 = pneg %p124
        $region42: #{tpu_custom_call.1} parent=27 // pred_check_branch
          %897 = sbr.rel (%p895) target = $region44
        $region43: #{tpu_custom_call.1} parent=27 // pred_region
          _
        $region44: #{tpu_custom_call.1} parent=27 // pred_fallthru
          _
        // Predicated region
        $region45: #{tpu_custom_call.1} parent=27 // pred_check
          %p898 = pneg %p150
        $region46: #{tpu_custom_call.1} parent=27 // pred_check_branch
          %900 = sbr.rel (%p898) target = $region48
        $region47: #{tpu_custom_call.1} parent=27 // pred_region
          _
        $region48: #{tpu_custom_call.1} parent=27 // pred_fallthru
          _
      $region28: #{tpu_custom_call.1} parent=5 // pred_fallthru
        _
      %p901 = scmp.le.s32.totalorder 2, %s14
      // Predicated region
      $region49: #{tpu_custom_call.1} parent=5 // pred_check
        %p902 = pneg %p901
      $region50: #{tpu_custom_call.1} parent=5 // pred_check_branch
        %904 = sbr.rel (%p902) target = $region52
      $region51: #{tpu_custom_call.1} parent=5 // pred_region
        %s905 = ssub.s32 %s14, 2
        // Predicated region
        $region53: #{tpu_custom_call.1} parent=51 // pred_check
          %p906 = pneg %p104
        $region54: #{tpu_custom_call.1} parent=51 // pred_check_branch
          %908 = sbr.rel (%p906) target = $region56
        $region55: #{tpu_custom_call.1} parent=51 // pred_region
          %s909 = sand.u32 %s89, 1
          %s910 = scalar_lea.sflag [#allocation4], %s909
          %s911 = sand.u32 %s89, 1
          %s912 = smul.addr %s911, 16
          %s913 = scalar_lea.vmem [#allocation3], %s912
          %914 = dma.done %s910, 256
        $region56: #{tpu_custom_call.1} parent=51 // pred_fallthru
          _
        // Predicated region
        $region57: #{tpu_custom_call.1} parent=51 // pred_check
          %p915 = pneg %p130
        $region58: #{tpu_custom_call.1} parent=51 // pred_check_branch
          %917 = sbr.rel (%p915) target = $region60
        $region59: #{tpu_custom_call.1} parent=51 // pred_region
          %p918 = scmp.lt.s32.totalorder %s25, 1
          %s919 = scalar_select %p918, %s25, 1
          %s920 = scalar_lea.vmem %s3, %s919
        $region60: #{tpu_custom_call.1} parent=51 // pred_fallthru
          _
        // Predicated region
        $region61: #{tpu_custom_call.1} parent=51 // pred_check
          %p921 = pneg %p156
        $region62: #{tpu_custom_call.1} parent=51 // pred_check_branch
          %923 = sbr.rel (%p921) target = $region64
        $region63: #{tpu_custom_call.1} parent=51 // pred_region
          %p924 = scmp.lt.s32.totalorder %s25, 1
          %s925 = scalar_select %p924, %s25, 1
          %s926 = scalar_lea.vmem %s4, %s925
        $region64: #{tpu_custom_call.1} parent=51 // pred_fallthru
          _
      $region52: #{tpu_custom_call.1} parent=5 // pred_fallthru
        _
    $region6: #{tpu_custom_call.1} parent=1 // loop_footer
      %s18 = sadd.s32 1, %s14
    $region7: #{tpu_custom_call.1} parent=1 // loop_footer_branch
      %13 = sbr.rel target = $region3
    $region8: #{tpu_custom_call.1} parent=1 // loop_exit
      _
    %927 = vsyncpa [#allocation4], 1
    %s928 = scalar_lea.sflag [#allocation4], 1
    %929 = vsyncpa %s928, 1

</llo_original>
